<compile_context>
chip_gen: v5e
topology: v5e:2x2
jax: 0.10.0
libtpu: 0.0.40
codegen_flags: <defaults>
</compile_context>

<pallas_src>
import math
import functools

import jax
import jax.numpy as jnp
from jax.experimental import pallas as pl
from jax.experimental.pallas import tpu as pltpu

LANES = 128


def _round_up(n, m):
    return ((n + m - 1) // m) * m


def ffnet_kernel(x_ref, wb1_ref, wb2_ref, wb3_ref, o_ref):
    """One batch tile through the whole (tiny) network, fully in VMEM.

    wb*_ref are bf16 slabs of shape [in_features + 1, out_features(_padded)]:
    rows [:-1] are the weight (stored as PyTorch W.T, i.e. [in, out]) and the
    last row is the bias, so each layer is y = x @ W + b (torch.nn.Linear).
    """
    x = x_ref[...].astype(jnp.bfloat16)

    wb1 = wb1_ref[...]                                    # [(n_feat + 1), h1]
    h = jnp.dot(x, wb1[:-1, :], preferred_element_type=jnp.float32)
    h = jnp.tanh(h + wb1[-1:, :].astype(jnp.float32)).astype(jnp.bfloat16)

    wb2 = wb2_ref[...]                                    # [(h1 + 1), h2]
    h = jnp.dot(h, wb2[:-1, :], preferred_element_type=jnp.float32)
    h = jnp.tanh(h + wb2[-1:, :].astype(jnp.float32)).astype(jnp.bfloat16)

    wb3 = wb3_ref[...]                                    # [(h2 + 1), n_out_pad]
    out = jnp.dot(h, wb3[:-1, :], preferred_element_type=jnp.float32)
    out = out + wb3[-1:, :].astype(jnp.float32)
    o_ref[...] = out.astype(o_ref.dtype)


def _pack_wb(w, b, out_pad=None):
    """Stack bias as an extra row under the [in, out] weight, cast to bf16,
    optionally zero-padding the out (lane) dimension."""
    wb = jnp.concatenate([w, b.reshape(1, -1)], axis=0).astype(jnp.bfloat16)
    if out_pad is not None and out_pad > wb.shape[1]:
        wb = jnp.pad(wb, ((0, 0), (0, out_pad - wb.shape[1])))
    return wb


@functools.partial(jax.jit, static_argnames=("tb_max",))
def ffnet_forward(x, params, tb_max=256):
    """x: [B, n_features] float32. params: list of (W[in, out], b[1, out]) f32."""
    (w1, b1), (w2, b2), (w3, b3) = params
    B, n_feat = x.shape
    n_out = w3.shape[1]
    n_out_pad = _round_up(n_out, LANES)

    wb1 = _pack_wb(w1, b1)
    wb2 = _pack_wb(w2, b2)
    wb3 = _pack_wb(w3, b3, out_pad=n_out_pad)

    # Batch tile: as large as the batch allows, capped. (VMEM is nowhere near a
    # constraint at these feature widths on v5e/v6e/v7x; the cap just creates a
    # >1-step grid for bigger batches so the pipeline / megacore kick in.)
    tb = min(tb_max, _round_up(B, 8))
    b_pad = _round_up(B, tb)
    if b_pad != B:
        x = jnp.pad(x, ((0, b_pad - B), (0, 0)))

    grid = (pl.cdiv(b_pad, tb),)
    resident = lambda shape: pl.BlockSpec(shape, lambda i: (0, 0))

    out = pl.pallas_call(
        ffnet_kernel,
        out_shape=jax.ShapeDtypeStruct((b_pad, n_out_pad), jnp.float32),
        grid=grid,
        in_specs=[
            pl.BlockSpec((tb, n_feat), lambda i: (i, 0)),   # pipelined per tile
            resident(wb1.shape),                            # VMEM-resident params
            resident(wb2.shape),
            resident(wb3.shape),
        ],
        out_specs=pl.BlockSpec((tb, n_out_pad), lambda i: (i, 0)),
        compiler_params=pltpu.CompilerParams(
            dimension_semantics=("parallel",),
        ),
    )(x, wb1, wb2, wb3)

    return out[:B, :n_out]


def init_linear(key, fan_in, fan_out):
    # Mirrors torch.nn.Linear default init: U(-1/sqrt(fan_in), 1/sqrt(fan_in)).
    kw, kb = jax.random.split(key)
    bound = 1.0 / math.sqrt(fan_in)
    # Stored transposed relative to PyTorch: [in, out].
    w = jax.random.uniform(kw, (fan_in, fan_out), jnp.float32, -bound, bound)
    b = jax.random.uniform(kb, (1, fan_out), jnp.float32, -bound, bound)
    return w, b


def reference_forward(x, params):
    # Pure-JAX reference mirroring the kernel's bf16 operand rounding
    # (f32 accumulation), so tolerances can stay tight.
    bf = lambda a: a.astype(jnp.bfloat16).astype(jnp.float32)
    (w1, b1), (w2, b2), (w3, b3) = params
    h = jnp.tanh(bf(x) @ bf(w1) + bf(b1))
    h = jnp.tanh(bf(h) @ bf(w2) + bf(b2))
    return bf(h) @ bf(w3) + bf(b3)


if __name__ == "__main__":
    # FFNet(n_features=16, hidden_sizes=[32, 32], n_outputs=8)
    n_features, hidden_sizes, n_outputs = 16, [32, 32], 8

    key = jax.random.PRNGKey(0)
    kx, k1, k2, k3 = jax.random.split(key, 4)

    params = [
        init_linear(k1, n_features, hidden_sizes[0]),
        init_linear(k2, hidden_sizes[0], hidden_sizes[1]),
        init_linear(k3, hidden_sizes[1], n_outputs),
    ]

    # Small batch (single grid step) and a larger one exercising grid > 1 plus
    # tail padding / slicing.
    for batch in (8, 300):
        x = jax.random.normal(jax.random.fold_in(kx, batch),
                              (batch, n_features), jnp.float32)
        out = jax.block_until_ready(ffnet_forward(x, params))
        ref = reference_forward(x, params)
        assert out.shape == (batch, n_outputs)
        assert jnp.allclose(out, ref, atol=2e-2, rtol=2e-2), (
            "max abs err", float(jnp.max(jnp.abs(out - ref))))

    print("KERNEL_OK")
</pallas_src>

<mosaic_0001>
module attributes {stable_mosaic.version = 11 : i64} {
  func.func @ffnet_kernel(%arg0: i32, %arg1: memref<8x16xf32, #tpu.memory_space<vmem>>, %arg2: memref<17x32xbf16, #tpu.memory_space<vmem>>, %arg3: memref<33x32xbf16, #tpu.memory_space<vmem>>, %arg4: memref<33x128xbf16, #tpu.memory_space<vmem>>, %arg5: memref<8x128xf32, #tpu.memory_space<vmem>>) attributes {dimension_semantics = [#tpu.dimension_semantics<parallel>], iteration_bounds = array<i64: 1>, scalar_prefetch = 0 : i64, scratch_operands = 0 : i64, tpu.core_type = #tpu.core_type<tc>, window_params = [{transform_indices = @transform_0, window_bounds = array<i64: 8, 16>}, {pipeline_mode = #tpu.pipeline_mode<synchronous>, transform_indices = @transform_1, window_bounds = array<i64: 17, 32>}, {pipeline_mode = #tpu.pipeline_mode<synchronous>, transform_indices = @transform_2, window_bounds = array<i64: 33, 32>}, {pipeline_mode = #tpu.pipeline_mode<synchronous>, transform_indices = @transform_3, window_bounds = array<i64: 33, 128>}, {transform_indices = @transform_4, window_bounds = array<i64: 8, 128>}]} {
    %c0 = arith.constant 0 : index
    %c0_0 = arith.constant 0 : index
    %0 = vector.load %arg1[%c0, %c0_0] : memref<8x16xf32, #tpu.memory_space<vmem>>, vector<8x16xf32>
    %1 = arith.truncf %0 : vector<8x16xf32> to vector<8x16xbf16>
    %c0_1 = arith.constant 0 : index
    %c0_2 = arith.constant 0 : index
    %2 = vector.load %arg2[%c0_1, %c0_2] : memref<17x32xbf16, #tpu.memory_space<vmem>>, vector<17x32xbf16>
    %3 = vector.extract_strided_slice %2 {offsets = [0, 0], sizes = [16, 32], strides = [1, 1]} : vector<17x32xbf16> to vector<16x32xbf16>
    %cst = arith.constant dense<0.000000e+00> : vector<8x32xf32>
    %4 = tpu.matmul %1, %3, %cst {dimension_numbers = #tpu.dot_dimension_numbers<[1], [0], [0], [1], [0, 0, 1, 1], [], []>} : vector<8x16xbf16>, vector<16x32xbf16>, vector<8x32xf32> -> vector<8x32xf32>
    %5 = vector.extract_strided_slice %2 {offsets = [16, 0], sizes = [1, 32], strides = [1, 1]} : vector<17x32xbf16> to vector<1x32xbf16>
    %6 = arith.extf %5 : vector<1x32xbf16> to vector<1x32xf32>
    %7 = vector.broadcast %6 : vector<1x32xf32> to vector<8x32xf32>
    %8 = arith.addf %4, %7 : vector<8x32xf32>
    %9 = math.tanh %8 : vector<8x32xf32>
    %10 = arith.truncf %9 : vector<8x32xf32> to vector<8x32xbf16>
    %c0_3 = arith.constant 0 : index
    %c0_4 = arith.constant 0 : index
    %11 = vector.load %arg3[%c0_3, %c0_4] : memref<33x32xbf16, #tpu.memory_space<vmem>>, vector<33x32xbf16>
    %12 = vector.extract_strided_slice %11 {offsets = [0, 0], sizes = [32, 32], strides = [1, 1]} : vector<33x32xbf16> to vector<32x32xbf16>
    %cst_5 = arith.constant dense<0.000000e+00> : vector<8x32xf32>
    %13 = tpu.matmul %10, %12, %cst_5 {dimension_numbers = #tpu.dot_dimension_numbers<[1], [0], [0], [1], [0, 0, 1, 1], [], []>} : vector<8x32xbf16>, vector<32x32xbf16>, vector<8x32xf32> -> vector<8x32xf32>
    %14 = vector.extract_strided_slice %11 {offsets = [32, 0], sizes = [1, 32], strides = [1, 1]} : vector<33x32xbf16> to vector<1x32xbf16>
    %15 = arith.extf %14 : vector<1x32xbf16> to vector<1x32xf32>
    %16 = vector.broadcast %15 : vector<1x32xf32> to vector<8x32xf32>
    %17 = arith.addf %13, %16 : vector<8x32xf32>
    %18 = math.tanh %17 : vector<8x32xf32>
    %19 = arith.truncf %18 : vector<8x32xf32> to vector<8x32xbf16>
    %c0_6 = arith.constant 0 : index
    %c0_7 = arith.constant 0 : index
    %20 = vector.load %arg4[%c0_6, %c0_7] : memref<33x128xbf16, #tpu.memory_space<vmem>>, vector<33x128xbf16>
    %21 = vector.extract_strided_slice %20 {offsets = [0, 0], sizes = [32, 128], strides = [1, 1]} : vector<33x128xbf16> to vector<32x128xbf16>
    %cst_8 = arith.constant dense<0.000000e+00> : vector<8x128xf32>
    %22 = tpu.matmul %19, %21, %cst_8 {dimension_numbers = #tpu.dot_dimension_numbers<[1], [0], [0], [1], [0, 0, 1, 1], [], []>} : vector<8x32xbf16>, vector<32x128xbf16>, vector<8x128xf32> -> vector<8x128xf32>
    %23 = vector.extract_strided_slice %20 {offsets = [32, 0], sizes = [1, 128], strides = [1, 1]} : vector<33x128xbf16> to vector<1x128xbf16>
    %24 = arith.extf %23 : vector<1x128xbf16> to vector<1x128xf32>
    %25 = vector.broadcast %24 : vector<1x128xf32> to vector<8x128xf32>
    %26 = arith.addf %22, %25 : vector<8x128xf32>
    %c0_9 = arith.constant 0 : index
    %c0_10 = arith.constant 0 : index
    %27 = vector.load %arg5[%c0_9, %c0_10] : memref<8x128xf32, #tpu.memory_space<vmem>>, vector<8x128xf32>
    tpu.vector_store %arg5[%c0_9, %c0_10], %26 {strides = array<i32>} : memref<8x128xf32, #tpu.memory_space<vmem>>, vector<8x128xf32>,
    return
  }
  func.func @transform_0(%arg0: i32) -> (i32, i32) {
    %c0_i32 = arith.constant 0 : i32
    %c0_i32_0 = arith.constant 0 : i32
    return %arg0, %c0_i32 : i32, i32
  }
  func.func @transform_1(%arg0: i32) -> (i32, i32) {
    %c0_i32 = arith.constant 0 : i32
    %c0_i32_0 = arith.constant 0 : i32
    %c0_i32_1 = arith.constant 0 : i32
    return %c0_i32, %c0_i32_0 : i32, i32
  }
  func.func @transform_2(%arg0: i32) -> (i32, i32) {
    %c0_i32 = arith.constant 0 : i32
    %c0_i32_0 = arith.constant 0 : i32
    %c0_i32_1 = arith.constant 0 : i32
    return %c0_i32, %c0_i32_0 : i32, i32
  }
  func.func @transform_3(%arg0: i32) -> (i32, i32) {
    %c0_i32 = arith.constant 0 : i32
    %c0_i32_0 = arith.constant 0 : i32
    %c0_i32_1 = arith.constant 0 : i32
    return %c0_i32, %c0_i32_0 : i32, i32
  }
  func.func @transform_4(%arg0: i32) -> (i32, i32) {
    %c0_i32 = arith.constant 0 : i32
    %c0_i32_0 = arith.constant 0 : i32
    return %arg0, %c0_i32 : i32, i32
  }
}

</mosaic_0001>

<llo_original>
// kernel: ffnet_forward.1
$region0: #{ffnet_forward.1}
  #allocation0 [shape = 'u32[]', space=smem, size = 0x4, offset = 0x4, fixed_abs, tag = 'smem constant byte address 0x4 - core index']
  #allocation1 [shape = 'u32[72,128]{1,0:T(1,128)}', space=vmem, size = 0x9000, scoped, tag = 'internal scratch']
  %s0 = inlined_call_operand.vmem [shape: f32[8,16], index: 0, kind: input, shape index: {}]
  %s1 = inlined_call_operand.vmem [shape: bf16[17,32], index: 1, kind: input, shape index: {}]
  %s2 = inlined_call_operand.vmem [shape: bf16[33,32], index: 2, kind: input, shape index: {}]
  %s3 = inlined_call_operand.vmem [shape: bf16[33,128], index: 3, kind: input, shape index: {}]
  %s4 = inlined_call_operand.hbm [shape: f32[8,128], index: 4, kind: output, shape index: {}]
  %s5 = sld [smem:[#allocation0]]
  $region26: #{ffnet_forward.1} parent=0
    _
  %s7 = ssub.s32 1, %s5
  %s8 = scalar_select 0, %s7, %s5
  $region1: #{ffnet_forward.1} parent=0
    #allocation2 [shape = 'u8[4096]{0}', space=vmem, size = 0x1000, scoped, tag = 'output window, operand 0, single buffered']
    #allocation3 [shape = 's32[1]{0}', space=sflag, size = 0x4, scoped, tag = 'scoped memory for ffnet_forward.1']
    %9 = vsyncpa [#allocation3], 0
    // Predicated region
    $region2: #{ffnet_forward.1} parent=1 // pred_check
      _
    $region3: #{ffnet_forward.1} parent=1 // pred_check_branch
      %11 = sbr.rel (0) target = $region5
    $region4: #{ffnet_forward.1} parent=1 // pred_region
      _
    $region5: #{ffnet_forward.1} parent=1 // pred_fallthru
      _
    // Predicated region
    $region6: #{ffnet_forward.1} parent=1 // pred_check
      _
    $region7: #{ffnet_forward.1} parent=1 // pred_check_branch
      %13 = sbr.rel (0) target = $region9
    $region8: #{ffnet_forward.1} parent=1 // pred_region
      _
    $region9: #{ffnet_forward.1} parent=1 // pred_fallthru
      _
    // Predicated region
    $region10: #{ffnet_forward.1} parent=1 // pred_check
      _
    $region11: #{ffnet_forward.1} parent=1 // pred_check_branch
      %15 = sbr.rel (0) target = $region13
    $region12: #{ffnet_forward.1} parent=1 // pred_region
      _
    $region13: #{ffnet_forward.1} parent=1 // pred_fallthru
      _
    // Predicated region
    $region14: #{ffnet_forward.1} parent=1 // pred_check
      _
    $region15: #{ffnet_forward.1} parent=1 // pred_check_branch
      %17 = sbr.rel (0) target = $region17
    $region16: #{ffnet_forward.1} parent=1 // pred_region
      _
    $region17: #{ffnet_forward.1} parent=1 // pred_fallthru
      _
    %v19 = vld [vmem:[%s0] sm:$0xff]
    %v20 = vpack.c.bf16 %v19, %v19
    %v21 = vld [vmem:[%s1] sm:$0xf]
    %v22 = vld [vmem:[%s1 + $0x4] sm:$0xf]
    %v23 = vld [vmem:[%s1 + $0x8] sm:$0x1]
    %v24 = vunpack.c.l.bf16 %v23
    %v25 = vperm.slane %v24, 0
    %v28 = vunpack.c.l.b16 %v21
    %v29 = vunpack.c.l.b16 %v22
    %v30 = vpack.c.b16 %v29, %v28
    %vm32 = vcmask 130048
    %v34 = vsel %vm32, %v20, 0
    %36 = vmatpush.bf16.msra.mxu0 0
    %37 = vmatpush.bf16.msra.mxu0 0
    %38 = vmatpush.bf16.msra.mxu0 0
    %39 = vmatpush.bf16.msra.mxu0 0
    %40 = vmatpush.bf16.msra.mxu0 0
    %41 = vmatpush.bf16.msra.mxu0 0
    %42 = vmatpush.bf16.msra.mxu0 0
    %43 = vmatpush.bf16.msra.mxu0 %v30
    %44 = vmatmul.bf16.gmra.mxu0 %v34
    %v45 = vpop.f32.mrf.mxu0
    %v46 = vadd.f32 %v25, %v45
    %v47 = vpop.f32.mrf.mxu0
    %48 = vdwg.mxu0
    %v49 = vtanh.pop %v46
    %v50 = vpack.c.bf16 %v49, %v49
    %v51 = vld [vmem:[%s2] sm:$0xf]
    %v52 = vld [vmem:[%s2 + $0x4] sm:$0xf]
    %v53 = vld [vmem:[%s2 + $0x8] sm:$0xf]
    %v54 = vld [vmem:[%s2 + $0xc] sm:$0xf]
    %v55 = vld [vmem:[%s2 + $0x10] sm:$0x1]
    %v56 = vunpack.c.l.bf16 %v55
    %v57 = vperm.slane %v56, 0
    %v62 = vunpack.c.l.b16 %v51
    %v63 = vunpack.c.l.b16 %v52
    %v64 = vunpack.c.l.b16 %v53
    %v65 = vunpack.c.l.b16 %v54
    %v66 = vpack.c.b16 %v63, %v62
    %v67 = vpack.c.b16 %v65, %v64
    %vm70 = vcmask 261120
    %v72 = vsel %vm70, %v50, 0
    %74 = vmatpush.bf16.msra.mxu0 0
    %75 = vmatpush.bf16.msra.mxu0 0
    %76 = vmatpush.bf16.msra.mxu0 0
    %77 = vmatpush.bf16.msra.mxu0 0
    %78 = vmatpush.bf16.msra.mxu0 0
    %79 = vmatpush.bf16.msra.mxu0 0
    %80 = vmatpush.bf16.msra.mxu0 %v67
    %81 = vmatpush.bf16.msra.mxu0 %v66
    %82 = vmatmul.bf16.gmra.mxu0 %v72
    %v83 = vpop.f32.mrf.mxu0
    %v84 = vadd.f32 %v57, %v83
    %v85 = vpop.f32.mrf.mxu0
    %86 = vdwg.mxu0
    %v87 = vtanh.pop %v84
    %v88 = vpack.c.bf16 %v87, %v87
    %v89 = vld [vmem:[%s3] sm:$0xf]
    %v90 = vld [vmem:[%s3 + $0x4] sm:$0xf]
    %v91 = vld [vmem:[%s3 + $0x8] sm:$0xf]
    %v92 = vld [vmem:[%s3 + $0xc] sm:$0xf]
    %v93 = vld [vmem:[%s3 + $0x10] sm:$0x1]
    %v94 = vunpack.c.l.bf16 %v93
    %v95 = vperm.slane %v94, 0
    %v100 = vunpack.c.l.b16 %v89
    %v101 = vunpack.c.l.b16 %v90
    %v102 = vunpack.c.l.b16 %v91
    %v103 = vunpack.c.l.b16 %v92
    %v104 = vpack.c.b16 %v101, %v100
    %v105 = vpack.c.b16 %v103, %v102
    %v109 = vsel %vm70, %v88, 0
    %111 = vmatpush.bf16.msra.mxu0 0
    %112 = vmatpush.bf16.msra.mxu0 0
    %113 = vmatpush.bf16.msra.mxu0 0
    %114 = vmatpush.bf16.msra.mxu0 0
    %115 = vmatpush.bf16.msra.mxu0 0
    %116 = vmatpush.bf16.msra.mxu0 0
    %117 = vmatpush.bf16.msra.mxu0 %v105
    %118 = vmatpush.bf16.msra.mxu0 %v104
    %119 = vmatmul.bf16.gmra.mxu0 %v109
    %v120 = vpop.f32.mrf.mxu0
    %v121 = vadd.f32 %v95, %v120
    %v122 = vpop.f32.mrf.mxu0
    %123 = vdwg.mxu0
    %124 = vst [vmem:[#allocation2] sm:$0xff] %v121
    // Predicated region
    $region18: #{ffnet_forward.1} parent=1 // pred_check
      _
    $region19: #{ffnet_forward.1} parent=1 // pred_check_branch
      %126 = sbr.rel (0) target = $region21
    $region20: #{ffnet_forward.1} parent=1 // pred_region
      %128 = vsyncadd [#allocation3], 0
      %s130 = sshll.u32 [#allocation2], 4
      %s131 = int_to_ptr.vmem [resolvable:$true] %s130
      %s132 = sshll.u32 %s4, 4
      %s133 = int_to_ptr.hbm [resolvable:$true] %s132
      %135 = dma.vmem_to_hbm [thread:$0]  %s131, 128, %s133, [#allocation3]
    $region21: #{ffnet_forward.1} parent=1 // pred_fallthru
      _
    // Predicated region
    $region22: #{ffnet_forward.1} parent=1 // pred_check
      _
    $region23: #{ffnet_forward.1} parent=1 // pred_check_branch
      %137 = sbr.rel (0) target = $region25
    $region24: #{ffnet_forward.1} parent=1 // pred_region
      %139 = dma.done [#allocation3], 128
    $region25: #{ffnet_forward.1} parent=1 // pred_fallthru
      _
    %140 = vsyncpa [#allocation3], 1

</llo_original>
